<compile_context>
chip_gen: v7x
topology: tpu7x:2x2x1
jax: 0.10.0
libtpu: 0.0.40
codegen_flags: <defaults>
</compile_context>

<pallas_src>
import jax
import jax.numpy as jnp
from jax.experimental import pallas as pl
from jax.experimental.pallas import tpu as pltpu


def loglinear_kernel(x_ref, w_ref, b_ref, o_ref):
    # x_ref: (TB, D) native dtype in VMEM; w_ref: (1, D) f32 in VMEM;
    # b_ref: (1,) f32 in SMEM; o_ref: (TB, 1) f32 in VMEM.
    x = x_ref[...].astype(jnp.float32)          # cast in-kernel (x.float())
    w = w_ref[...].astype(jnp.float32)          # (1, D), broadcasts over rows
    # VPU elementwise multiply + XLU lane reduce (D sits on the lane axis).
    h = jnp.sum(x * w, axis=-1, keepdims=True)  # (TB, 1), f32 accumulation
    o_ref[...] = h + b_ref[0]


def loglinear_forward(x, weight, bias, *, block_rows=None):
    """x: (B, D) any float dtype; weight: (1, D); bias: (1,). Returns (B, 1) f32."""
    B, D = x.shape
    assert weight.shape == (1, D)

    # Pick a batch tile: big enough to amortize per-grid-step overhead (~0.35us),
    # small enough that 2 double-buffered input tiles fit the smallest scoped
    # VMEM budget (v7x: 32 MiB default) with lots of headroom.
    if block_rows is None:
        bytes_per_row = D * jnp.dtype(x.dtype).itemsize
        target_buf_bytes = 4 * 1024 * 1024          # ~4 MiB per input buffer
        block_rows = max(8, min(1024, target_buf_bytes // max(bytes_per_row, 1)))
    tb = min(block_rows, B)
    if tb >= 8:
        tb = (tb // 8) * 8                          # sublane-aligned tile rows
    # else: tb == B < 8 -> block equals full array dim, which Mosaic accepts.

    n_tiles = pl.cdiv(B, tb)
    b_pad = n_tiles * tb
    if b_pad != B:
        # Pad the batch; padded rows compute bias-only junk and are sliced off.
        x = jnp.pad(x, ((0, b_pad - B), (0, 0)))

    w = weight                                      # (1, D), cast inside kernel
    b = bias.reshape((1,)).astype(jnp.float32)      # scalar bias -> SMEM

    out = pl.pallas_call(
        loglinear_kernel,
        out_shape=jax.ShapeDtypeStruct((b_pad, 1), jnp.float32),
        grid=(n_tiles,),
        in_specs=[
            pl.BlockSpec((tb, D), lambda i: (i, 0)),            # streamed x tile
            pl.BlockSpec((1, D), lambda i: (0, 0)),             # resident weight
            pl.BlockSpec(memory_space=pltpu.MemorySpace.SMEM),  # scalar bias
        ],
        out_specs=pl.BlockSpec((tb, 1), lambda i: (i, 0)),
        compiler_params=pltpu.CompilerParams(
            dimension_semantics=("parallel",),      # batch tiles are independent
        ),
    )(x, w, b)
    return out[:B]


if __name__ == "__main__":
    # Deterministic small example consistent with nn.Linear(embedding_dim, 1).
    embedding_dim = 32
    batch = 16

    key = jax.random.PRNGKey(0)
    kx, kw, kb = jax.random.split(key, 3)

    # PyTorch Linear default init: U(-1/sqrt(fan_in), 1/sqrt(fan_in))
    bound = 1.0 / jnp.sqrt(jnp.float32(embedding_dim))
    weight = jax.random.uniform(kw, (1, embedding_dim), jnp.float32, -bound, bound)
    bias = jax.random.uniform(kb, (1,), jnp.float32, -bound, bound)

    # Native bf16 input (cast to f32 happens inside the kernel, as x.float()).
    x = jax.random.normal(kx, (batch, embedding_dim), jnp.float32).astype(jnp.bfloat16)

    ref = x.astype(jnp.float32) @ weight.T + bias   # plain-JAX reference

    # 1) Default tile (single grid step at this toy size).
    out = jax.block_until_ready(loglinear_forward(x, weight, bias))
    assert out.shape == (batch, 1)
    assert jnp.allclose(out, ref, atol=1e-5, rtol=1e-5)

    # 2) Force multi-tile grid to exercise the pipelined path.
    out2 = jax.block_until_ready(loglinear_forward(x, weight, bias, block_rows=8))
    assert jnp.allclose(out2, ref, atol=1e-5, rtol=1e-5)

    # 3) Non-divisible batch to exercise the padding path.
    xb = x[:10]
    out3 = jax.block_until_ready(loglinear_forward(xb, weight, bias, block_rows=8))
    assert out3.shape == (10, 1)
    assert jnp.allclose(out3, ref[:10], atol=1e-5, rtol=1e-5)

    print("KERNEL_OK")
</pallas_src>

<mosaic_0001>
module attributes {stable_mosaic.version = 11 : i64} {
  func.func @loglinear_kernel(%arg0: i32, %arg1: memref<16x32xbf16, #tpu.memory_space<vmem>>, %arg2: memref<1x32xf32, #tpu.memory_space<vmem>>, %arg3: memref<1xf32, #tpu.memory_space<smem>>, %arg4: memref<16x1xf32, #tpu.memory_space<vmem>>) attributes {dimension_semantics = [#tpu.dimension_semantics<parallel>], iteration_bounds = array<i64: 1>, scalar_prefetch = 0 : i64, scratch_operands = 0 : i64, tpu.core_type = #tpu.core_type<tc>, window_params = [{transform_indices = @transform_0, window_bounds = array<i64: 16, 32>}, {pipeline_mode = #tpu.pipeline_mode<synchronous>, transform_indices = @transform_1, window_bounds = array<i64: 1, 32>}, {transform_indices = @transform_2, window_bounds = array<i64: 1>}, {transform_indices = @transform_3, window_bounds = array<i64: 16, 1>}]} {
    %c0 = arith.constant 0 : index
    %c0_0 = arith.constant 0 : index
    %0 = vector.load %arg1[%c0, %c0_0] : memref<16x32xbf16, #tpu.memory_space<vmem>>, vector<16x32xbf16>
    %1 = arith.extf %0 : vector<16x32xbf16> to vector<16x32xf32>
    %c0_1 = arith.constant 0 : index
    %c0_2 = arith.constant 0 : index
    %2 = vector.load %arg2[%c0_1, %c0_2] : memref<1x32xf32, #tpu.memory_space<vmem>>, vector<1x32xf32>
    %3 = vector.broadcast %2 : vector<1x32xf32> to vector<16x32xf32>
    %4 = arith.mulf %1, %3 : vector<16x32xf32>
    %cst = arith.constant dense<0.000000e+00> : vector<16xf32>
    %5 = vector.multi_reduction <add>, %4, %cst [1] : vector<16x32xf32> to vector<16xf32>
    %6 = vector.shape_cast %5 : vector<16xf32> to vector<16x1xf32>
    %c0_3 = arith.constant 0 : index
    %7 = memref.load %arg3[%c0_3] : memref<1xf32, #tpu.memory_space<smem>>
    %8 = vector.broadcast %7 : f32 to vector<16x1xf32>
    %9 = arith.addf %6, %8 : vector<16x1xf32>
    %c0_4 = arith.constant 0 : index
    %c0_5 = arith.constant 0 : index
    %10 = vector.load %arg4[%c0_4, %c0_5] : memref<16x1xf32, #tpu.memory_space<vmem>>, vector<16x1xf32>
    tpu.vector_store %arg4[%c0_4, %c0_5], %9 {strides = array<i32>} : memref<16x1xf32, #tpu.memory_space<vmem>>, vector<16x1xf32>,
    return
  }
  func.func @transform_0(%arg0: i32) -> (i32, i32) {
    %c0_i32 = arith.constant 0 : i32
    %c0_i32_0 = arith.constant 0 : i32
    return %arg0, %c0_i32 : i32, i32
  }
  func.func @transform_1(%arg0: i32) -> (i32, i32) {
    %c0_i32 = arith.constant 0 : i32
    %c0_i32_0 = arith.constant 0 : i32
    %c0_i32_1 = arith.constant 0 : i32
    return %c0_i32, %c0_i32_0 : i32, i32
  }
  func.func @transform_2(%arg0: i32) -> i32 {
    %c0_i32 = arith.constant 0 : i32
    %c0_i32_0 = arith.constant 0 : i32
    return %c0_i32 : i32
  }
  func.func @transform_3(%arg0: i32) -> (i32, i32) {
    %c0_i32 = arith.constant 0 : i32
    %c0_i32_0 = arith.constant 0 : i32
    return %arg0, %c0_i32 : i32, i32
  }
}

</mosaic_0001>

<llo_original>
// kernel: tpu_custom_call.1
$region0: #{tpu_custom_call.1}
  #allocation0 [shape = 'u32[]', space=smem, size = 0x4, offset = 0x4, fixed_abs, tag = 'smem constant byte address 0x4 - core index']
  #allocation1 [shape = 'u32[144,128]{1,0:T(1,128)}', space=vmem, size = 0x12000, scoped, tag = 'internal scratch']
  #allocation2 [shape = 'f32[1]{0:T(128)S(6)}', space=smem, size = 0x200, scoped, tag = 'scoped memory for tpu_custom_call.1']
  %s0 = inlined_call_operand.hbm [shape: bf16[16,32], index: 0, kind: input, shape index: {}]
  %s1 = inlined_call_operand.vmem [shape: f32[1,32], index: 1, kind: input, shape index: {}]
  %s2 = inlined_call_operand.<no memory space> [shape: f32[1], index: 2, kind: input, shape index: {}]
  %s3 = inlined_call_operand.vmem [shape: f32[16,1], index: 3, kind: output, shape index: {}]
  %s4 = sld [smem:[#allocation0]]
  $region26: #{tpu_custom_call.1} parent=0
    _
  %s6 = ssub.s32 1, %s4
  %s7 = scalar_select 0, %s6, %s4
  %8 = sst [smem:[#allocation2]] %s2
  $region1: #{tpu_custom_call.1} parent=0
    #allocation3 [shape = 'u8[4096]{0}', space=vmem, size = 0x1000, scoped, tag = 'input window, operand 0, single buffered']
    #allocation4 [shape = 's32[1]{0}', space=sflag, size = 0x4, scoped, tag = 'scoped memory for tpu_custom_call.1']
    %9 = vsyncpa [#allocation4], 0
    // Predicated region
    $region2: #{tpu_custom_call.1} parent=1 // pred_check
      _
    $region3: #{tpu_custom_call.1} parent=1 // pred_check_branch
      %11 = sbr.rel (0) target = $region5
    $region4: #{tpu_custom_call.1} parent=1 // pred_region
      %s13 = ssub.s32 128, 128
      %14 = vsyncadd [#allocation4], %s13
      %s15 = sshll.u32 [#allocation3], 4
      %s16 = int_to_ptr.vmem [resolvable:$true] %s15
      %21 = dma.hbm_to_vmem [thread:$0]  %s0, 128, %s16, [#allocation4], 64, 64, 4
    $region5: #{tpu_custom_call.1} parent=1 // pred_fallthru
      _
    // Predicated region
    $region6: #{tpu_custom_call.1} parent=1 // pred_check
      _
    $region7: #{tpu_custom_call.1} parent=1 // pred_check_branch
      %23 = sbr.rel (0) target = $region9
    $region8: #{tpu_custom_call.1} parent=1 // pred_region
      _
    $region9: #{tpu_custom_call.1} parent=1 // pred_fallthru
      _
    // Predicated region
    $region10: #{tpu_custom_call.1} parent=1 // pred_check
      _
    $region11: #{tpu_custom_call.1} parent=1 // pred_check_branch
      %25 = sbr.rel (0) target = $region13
    $region12: #{tpu_custom_call.1} parent=1 // pred_region
      _
    $region13: #{tpu_custom_call.1} parent=1 // pred_fallthru
      _
    // Predicated region
    $region14: #{tpu_custom_call.1} parent=1 // pred_check
      _
    $region15: #{tpu_custom_call.1} parent=1 // pred_check_branch
      %27 = sbr.rel (0) target = $region17
    $region16: #{tpu_custom_call.1} parent=1 // pred_region
      %28 = dma.done [#allocation4], 128
    $region17: #{tpu_custom_call.1} parent=1 // pred_fallthru
      _
    %v29 = vld [vmem:[#allocation3] sm:$0xf]
    %v30 = vld [vmem:[#allocation3 + $0x4] sm:$0xf]
    %v31 = vunpack.c.l.bf16 %v29
    %v32 = vunpack.c.l.bf16 %v30
    %v33 = vld [vmem:[%s1] sm:$0x1]
    %v35 = vlaneseq
    %v36 = vshrl.u32 %v35, 7
    %v37 = vsub.s32 0, %v36
    %v38 = vrot.slane %v33, %v37
    %v40 = vmul.f32 %v31, %v38
    %v41 = vmul.f32 %v32, %v38
    %vm42 = vcmask 261120
    %v43 = vsel %vm42, %v40, 0.0
    %44 = vadd.xlane.f32.xlu0 %v43
    %v45 = vpop.xlane.xlu0 %44
    %v46 = vsel %vm42, %v41, 0.0
    %47 = vadd.xlane.f32.xlu0 %v46
    %v48 = vpop.xlane.xlu0 %47
    %s49 = sld [smem:[#allocation2]]
    %v50 = vstv %s49
    %v51 = vadd.f32 %v45, %v50
    %v52 = vadd.f32 %v48, %v50
    %vm53 = vcmask 7168
    %54 = vst.msk [vmem:[%s3] sm:$0xff] %vm53, %v51
    %55 = vst.msk [vmem:[%s3 + $0x8] sm:$0xff] %vm53, %v52
    // Predicated region
    $region18: #{tpu_custom_call.1} parent=1 // pred_check
      _
    $region19: #{tpu_custom_call.1} parent=1 // pred_check_branch
      %57 = sbr.rel (0) target = $region21
    $region20: #{tpu_custom_call.1} parent=1 // pred_region
      _
    $region21: #{tpu_custom_call.1} parent=1 // pred_fallthru
      _
    // Predicated region
    $region22: #{tpu_custom_call.1} parent=1 // pred_check
      _
    $region23: #{tpu_custom_call.1} parent=1 // pred_check_branch
      %59 = sbr.rel (0) target = $region25
    $region24: #{tpu_custom_call.1} parent=1 // pred_region
      _
    $region25: #{tpu_custom_call.1} parent=1 // pred_fallthru
      _
    %60 = vsyncpa [#allocation4], 1

</llo_original>
